<compile_context>
chip_gen: v6e
topology: v6e:2x2x1
jax: 0.10.0
libtpu: 0.0.40
codegen_flags: <defaults>
</compile_context>

<pallas_src>
import jax
import jax.numpy as jnp
from jax.experimental import pallas as pl
from jax.experimental.pallas import tpu as pltpu


# --------------------------------------------------------------------------
# Path 1: true no-copy identity (output buffer IS the input buffer).
# --------------------------------------------------------------------------
def _alias_identity_kernel(x_ref, o_ref, flag_ref):
    # o_ref is aliased to x_ref via input_output_aliases={0: 0}; the identity
    # is already materialized in HBM, so the body intentionally moves no data.
    # The tiny SMEM write just keeps the lowered kernel body non-empty.
    del x_ref, o_ref
    flag_ref[0] = jnp.int32(1)


def skip_bn(x: jax.Array) -> jax.Array:
    """SkipBN.forward(x) == x, with zero HBM traffic inside the pallas_call."""
    if x.size == 0:
        return x
    return pl.pallas_call(
        _alias_identity_kernel,
        out_shape=jax.ShapeDtypeStruct(x.shape, x.dtype),
        in_specs=[pl.BlockSpec(memory_space=pl.ANY)],
        out_specs=pl.BlockSpec(memory_space=pl.ANY),
        scratch_shapes=[pltpu.SMEM((1,), jnp.int32)],
        input_output_aliases={0: 0},
    )(x)


# --------------------------------------------------------------------------
# Path 2: physical copy as direct HBM->HBM DMA(s) — no VMEM staging, no grid.
# --------------------------------------------------------------------------
_CHUNK_THRESHOLD_BYTES = 1 << 20  # only split into multiple DMAs above ~1 MiB


def _make_hbm_copy_kernel(n_chunks: int, chunk: int):
    def kernel(x_ref, o_ref, sems):
        if n_chunks == 1:
            cp = pltpu.make_async_copy(x_ref, o_ref, sems.at[0])
            cp.start()
            cp.wait()
        else:
            # Issue all descriptors, then wait: a few DMAs overlap in flight.
            for c in range(n_chunks):
                sl = pl.ds(c * chunk, chunk)
                pltpu.make_async_copy(x_ref.at[sl], o_ref.at[sl], sems.at[c]).start()
            for c in range(n_chunks):
                sl = pl.ds(c * chunk, chunk)
                pltpu.make_async_copy(x_ref.at[sl], o_ref.at[sl], sems.at[c]).wait()

    return kernel


def skip_bn_copy(x: jax.Array) -> jax.Array:
    """Identity realized into a fresh buffer: one (or a few) HBM->HBM DMA(s)."""
    if x.size == 0:
        return x

    nbytes = x.size * jnp.dtype(x.dtype).itemsize
    n_chunks = 1
    chunk = x.shape[0] if x.ndim >= 1 else 1
    if x.ndim >= 1 and nbytes >= _CHUNK_THRESHOLD_BYTES:
        for n in (4, 2):
            if x.shape[0] >= n and x.shape[0] % n == 0:
                n_chunks, chunk = n, x.shape[0] // n
                break

    return pl.pallas_call(
        _make_hbm_copy_kernel(n_chunks, chunk),
        out_shape=jax.ShapeDtypeStruct(x.shape, x.dtype),
        in_specs=[pl.BlockSpec(memory_space=pl.ANY)],
        out_specs=pl.BlockSpec(memory_space=pl.ANY),
        scratch_shapes=[pltpu.SemaphoreType.DMA((n_chunks,))],
    )(x)


if __name__ == "__main__":
    key = jax.random.PRNGKey(0)
    x = jax.random.normal(key, (2, 4, 16, 16), dtype=jnp.float32)

    # Zero-copy aliased identity path.
    y = skip_bn(x)
    jax.block_until_ready(y)
    assert y.shape == x.shape and y.dtype == x.dtype
    assert bool(jnp.array_equal(y, x))

    # Physical-copy path (single HBM->HBM DMA for this small input).
    y2 = skip_bn_copy(x)
    jax.block_until_ready(y2)
    assert y2.shape == x.shape and y2.dtype == x.dtype
    assert bool(jnp.array_equal(y2, x))

    # Larger input (2 MiB) to exercise the multi-descriptor DMA path.
    xl = jax.random.normal(jax.random.PRNGKey(1), (16, 256, 128), dtype=jnp.float32)
    yl = skip_bn_copy(xl)
    jax.block_until_ready(yl)
    assert bool(jnp.array_equal(yl, xl))

    print("KERNEL_OK")
</pallas_src>

<mosaic_0001>
module attributes {stable_mosaic.version = 11 : i64} {
  func.func @_alias_identity_kernel(%arg0: memref<2x4x16x16xf32, #tpu.memory_space<any>>, %arg1: memref<2x4x16x16xf32, #tpu.memory_space<any>>, %arg2: memref<1xi32, #tpu.memory_space<smem>>) attributes {dimension_semantics = [], scalar_prefetch = 0 : i64, scratch_operands = 1 : i64, tpu.core_type = #tpu.core_type<tc>} {
    %c1_i32 = arith.constant 1 : i32
    %c0 = arith.constant 0 : index
    %0 = memref.load %arg2[%c0] : memref<1xi32, #tpu.memory_space<smem>>
    memref.store %c1_i32, %arg2[%c0] : memref<1xi32, #tpu.memory_space<smem>>
    return
  }
}

</mosaic_0001>

<llo_original>
// kernel: tpu_custom_call.1
$region0: #{tpu_custom_call.1}
  #allocation0 [shape = 'u32[]', space=smem, size = 0x4, offset = 0x4, fixed_abs, tag = 'smem constant byte address 0x4 - core index']
  #allocation1 [shape = 'u32[144,128]{1,0:T(1,128)}', space=vmem, size = 0x12000, scoped, tag = 'internal scratch']
  #allocation2 [shape = 's32[1]{0:T(128)}', space=smem, size = 0x200, scoped, tag = 'scratch operand']
  %s0 = inlined_call_operand.hbm [shape: f32[2,4,16,16], index: 0, kind: input, shape index: {}, may-alias: {0,1}]
  %s1 = inlined_call_operand.hbm [shape: f32[2,4,16,16], index: 1, kind: output, shape index: {}, may-alias: {0,1}]
  %s2 = sld [smem:[#allocation0]]
  $region2: #{tpu_custom_call.1} parent=0
    _
  %s4 = ssub.s32 1, %s2
  %s5 = scalar_select 0, %s4, %s2
  %s6 = scalar_lea.smem [#allocation2], 0
  %7 = sst [smem:[%s6]] 1

</llo_original>
